<compile_context>
chip_gen: v5e
topology: v5e:2x2
jax: 0.10.0
libtpu: 0.0.40
codegen_flags: <defaults>
</compile_context>

<pallas_src>
import functools

import jax
import jax.numpy as jnp
from jax.experimental import pallas as pl
from jax.experimental.pallas import tpu as pltpu


def _qmlp_kernel(num_layers, mxu_dtype, s_ref, a_ref, *refs):
    """refs = (w0_s, w0_a, w1..w_{L-1}, b0..b_{L-1}, out_ref).

    Computes ReLU((s|a) @ W0 + b0) followed by [Linear -> ReLU] for the
    remaining layers; the final activation is ReLU (final_activation='relu').
    """
    w_refs = refs[: num_layers + 1]                        # w0_s, w0_a, w1..w_{L-1}
    b_refs = refs[num_layers + 1: 2 * num_layers + 1]      # b0..b_{L-1}
    out_ref = refs[-1]

    # Layer 0: fused concat -> split-weight matmul (f32 accumulate on the MXU).
    s_blk = s_ref[...].astype(mxu_dtype)
    a_blk = a_ref[...].astype(mxu_dtype)
    h = (jnp.dot(s_blk, w_refs[0][...], preferred_element_type=jnp.float32)
         + jnp.dot(a_blk, w_refs[1][...], preferred_element_type=jnp.float32))
    h = jnp.maximum(h + b_refs[0][...].astype(jnp.float32), 0.0)

    # Remaining layers (incl. the final hidden->1 layer, with trailing ReLU).
    for i in range(1, num_layers):
        h = jnp.dot(h.astype(mxu_dtype), w_refs[i + 1][...],
                    preferred_element_type=jnp.float32)
        h = jnp.maximum(h + b_refs[i][...].astype(jnp.float32), 0.0)

    out_ref[...] = h.astype(out_ref.dtype)


def qmlp_forward(s, a, weights, biases, *, block_batch=512,
                 mxu_dtype=jnp.bfloat16):
    """Pallas implementation of QMLP.forward(s, a).

    s: (B, 1, state_dim) f32;  a: (B, action_dim) f32
    weights[i]: (in_i, out_i);  biases[i]: (1, out_i)
    returns: (B, 1) f32
    """
    s2 = jnp.squeeze(s, axis=1)                 # metadata-only reshape (B, S)
    B, S = s2.shape
    A = a.shape[1]
    num_layers = len(weights)
    out_dim = weights[-1].shape[1]              # = 1

    # Split the first-layer weight into state/action row-blocks at trace time
    # (static slices of a tiny constant array; avoids concatenating activations).
    w0 = weights[0]
    assert w0.shape[0] == S + A
    mxu_weights = ([w0[:S, :].astype(mxu_dtype), w0[S:, :].astype(mxu_dtype)]
                   + [w.astype(mxu_dtype) for w in weights[1:]])
    biases_f32 = [b.astype(jnp.float32) for b in biases]

    # Batch tiling: full batch if small, otherwise 512-row (multiple-of-8) tiles.
    tile_b = B if B <= block_batch else block_batch
    grid = (pl.cdiv(B, tile_b),)

    in_specs = [
        pl.BlockSpec((tile_b, S), lambda i: (i, 0)),   # s block, pipelined
        pl.BlockSpec((tile_b, A), lambda i: (i, 0)),   # a block, pipelined
    ]
    for w in mxu_weights:                               # weights: resident
        in_specs.append(pl.BlockSpec(w.shape, lambda i: (0, 0)))
    for b in biases_f32:                                # biases: resident
        in_specs.append(pl.BlockSpec(b.shape, lambda i: (0, 0)))
    out_spec = pl.BlockSpec((tile_b, out_dim), lambda i: (i, 0))

    kernel = functools.partial(_qmlp_kernel, num_layers, mxu_dtype)

    # NOTE: weights for this net are tiny, so the default scoped-VMEM limit is
    # ample on all generations; if hidden_dim/depth are scaled up, set
    # pltpu.CompilerParams(vmem_limit_bytes=...) with headroom (v7x has 64 MiB).
    return pl.pallas_call(
        kernel,
        out_shape=jax.ShapeDtypeStruct((B, out_dim), jnp.float32),
        grid=grid,
        in_specs=in_specs,
        out_specs=out_spec,
        compiler_params=pltpu.CompilerParams(
            dimension_semantics=("parallel",),   # shard batch tiles across TCs (v7x)
        ),
    )(s2, a, *mxu_weights, *biases_f32)


def init_qmlp_params(key, state_dim, action_dim, hidden_dim, depth):
    """Deterministic synthetic init matching the PyTorch layer shapes.

    Layers: (state+action)->hidden, [hidden->hidden] * (depth-1), hidden->1.
    """
    dims = [state_dim + action_dim] + [hidden_dim] * depth + [1]
    weights, biases = [], []
    for i in range(len(dims) - 1):
        key, wk, bk = jax.random.split(key, 3)
        scale = 1.0 / jnp.sqrt(jnp.float32(dims[i]))
        w = jax.random.uniform(wk, (dims[i], dims[i + 1]), jnp.float32,
                               minval=-scale, maxval=scale)
        b = jax.random.uniform(bk, (1, dims[i + 1]), jnp.float32,
                               minval=-scale, maxval=scale)
        weights.append(w)
        biases.append(b)
    return weights, biases


if __name__ == "__main__":
    # Small shapes implied by the module; hidden_dim chosen as a multiple of
    # 128 so intermediate layers use the full vreg lane width.
    B = 8
    state_dim = 12
    action_dim = 4
    hidden_dim = 128
    depth = 2

    key = jax.random.PRNGKey(0)
    key, ks, ka, kp = jax.random.split(key, 4)
    s = jax.random.normal(ks, (B, 1, state_dim), jnp.float32)   # (B, 1, S)
    a = jax.random.normal(ka, (B, action_dim), jnp.float32)

    weights, biases = init_qmlp_params(kp, state_dim, action_dim, hidden_dim, depth)

    out = qmlp_forward(s, a, weights, biases)
    out = jax.block_until_ready(out)

    # Pure-JAX reference at the same matmul precision (bf16 inputs, f32 acc).
    h = jnp.concatenate([jnp.squeeze(s, 1), a], axis=1)
    for w, b in zip(weights, biases):
        h = jnp.dot(h.astype(jnp.bfloat16), w.astype(jnp.bfloat16),
                    preferred_element_type=jnp.float32)
        h = jnp.maximum(h + b, 0.0)

    assert out.shape == (B, 1)
    assert jnp.allclose(out, h, atol=1e-3, rtol=1e-3)

    print("KERNEL_OK")
</pallas_src>

<mosaic_0001>
module attributes {stable_mosaic.version = 11 : i64} {
  func.func @_qmlp_kernel(%arg0: i32, %arg1: memref<8x12xf32, #tpu.memory_space<vmem>>, %arg2: memref<8x4xf32, #tpu.memory_space<vmem>>, %arg3: memref<12x128xbf16, #tpu.memory_space<vmem>>, %arg4: memref<4x128xbf16, #tpu.memory_space<vmem>>, %arg5: memref<128x128xbf16, #tpu.memory_space<vmem>>, %arg6: memref<128x1xbf16, #tpu.memory_space<vmem>>, %arg7: memref<1x128xf32, #tpu.memory_space<vmem>>, %arg8: memref<1x128xf32, #tpu.memory_space<vmem>>, %arg9: memref<1x1xf32, #tpu.memory_space<vmem>>, %arg10: memref<8x1xf32, #tpu.memory_space<vmem>>) attributes {dimension_semantics = [#tpu.dimension_semantics<parallel>], iteration_bounds = array<i64: 1>, scalar_prefetch = 0 : i64, scratch_operands = 0 : i64, tpu.core_type = #tpu.core_type<tc>, window_params = [{transform_indices = @transform_0, window_bounds = array<i64: 8, 12>}, {transform_indices = @transform_1, window_bounds = array<i64: 8, 4>}, {pipeline_mode = #tpu.pipeline_mode<synchronous>, transform_indices = @transform_2, window_bounds = array<i64: 12, 128>}, {pipeline_mode = #tpu.pipeline_mode<synchronous>, transform_indices = @transform_3, window_bounds = array<i64: 4, 128>}, {pipeline_mode = #tpu.pipeline_mode<synchronous>, transform_indices = @transform_4, window_bounds = array<i64: 128, 128>}, {pipeline_mode = #tpu.pipeline_mode<synchronous>, transform_indices = @transform_5, window_bounds = array<i64: 128, 1>}, {pipeline_mode = #tpu.pipeline_mode<synchronous>, transform_indices = @transform_6, window_bounds = array<i64: 1, 128>}, {pipeline_mode = #tpu.pipeline_mode<synchronous>, transform_indices = @transform_7, window_bounds = array<i64: 1, 128>}, {pipeline_mode = #tpu.pipeline_mode<synchronous>, transform_indices = @transform_8, window_bounds = array<i64: 1, 1>}, {transform_indices = @transform_9, window_bounds = array<i64: 8, 1>}]} {
    %c0 = arith.constant 0 : index
    %c0_0 = arith.constant 0 : index
    %0 = vector.load %arg1[%c0, %c0_0] : memref<8x12xf32, #tpu.memory_space<vmem>>, vector<8x12xf32>
    %1 = arith.truncf %0 : vector<8x12xf32> to vector<8x12xbf16>
    %c0_1 = arith.constant 0 : index
    %c0_2 = arith.constant 0 : index
    %2 = vector.load %arg2[%c0_1, %c0_2] : memref<8x4xf32, #tpu.memory_space<vmem>>, vector<8x4xf32>
    %3 = arith.truncf %2 : vector<8x4xf32> to vector<8x4xbf16>
    %c0_3 = arith.constant 0 : index
    %c0_4 = arith.constant 0 : index
    %4 = vector.load %arg3[%c0_3, %c0_4] : memref<12x128xbf16, #tpu.memory_space<vmem>>, vector<12x128xbf16>
    %cst = arith.constant dense<0.000000e+00> : vector<8x128xf32>
    %5 = tpu.matmul %1, %4, %cst {dimension_numbers = #tpu.dot_dimension_numbers<[1], [0], [0], [1], [0, 0, 1, 1], [], []>} : vector<8x12xbf16>, vector<12x128xbf16>, vector<8x128xf32> -> vector<8x128xf32>
    %c0_5 = arith.constant 0 : index
    %c0_6 = arith.constant 0 : index
    %6 = vector.load %arg4[%c0_5, %c0_6] : memref<4x128xbf16, #tpu.memory_space<vmem>>, vector<4x128xbf16>
    %cst_7 = arith.constant dense<0.000000e+00> : vector<8x128xf32>
    %7 = tpu.matmul %3, %6, %cst_7 {dimension_numbers = #tpu.dot_dimension_numbers<[1], [0], [0], [1], [0, 0, 1, 1], [], []>} : vector<8x4xbf16>, vector<4x128xbf16>, vector<8x128xf32> -> vector<8x128xf32>
    %8 = arith.addf %5, %7 : vector<8x128xf32>
    %c0_8 = arith.constant 0 : index
    %c0_9 = arith.constant 0 : index
    %9 = vector.load %arg7[%c0_8, %c0_9] : memref<1x128xf32, #tpu.memory_space<vmem>>, vector<1x128xf32>
    %10 = vector.broadcast %9 : vector<1x128xf32> to vector<8x128xf32>
    %11 = arith.addf %8, %10 : vector<8x128xf32>
    %cst_10 = arith.constant 0.000000e+00 : f32
    %12 = vector.broadcast %cst_10 : f32 to vector<8x128xf32>
    %13 = arith.maximumf %11, %12 : vector<8x128xf32>
    %14 = arith.truncf %13 : vector<8x128xf32> to vector<8x128xbf16>
    %c0_11 = arith.constant 0 : index
    %c0_12 = arith.constant 0 : index
    %15 = vector.load %arg5[%c0_11, %c0_12] : memref<128x128xbf16, #tpu.memory_space<vmem>>, vector<128x128xbf16>
    %cst_13 = arith.constant dense<0.000000e+00> : vector<8x128xf32>
    %16 = tpu.matmul %14, %15, %cst_13 {dimension_numbers = #tpu.dot_dimension_numbers<[1], [0], [0], [1], [0, 0, 1, 1], [], []>} : vector<8x128xbf16>, vector<128x128xbf16>, vector<8x128xf32> -> vector<8x128xf32>
    %c0_14 = arith.constant 0 : index
    %c0_15 = arith.constant 0 : index
    %17 = vector.load %arg8[%c0_14, %c0_15] : memref<1x128xf32, #tpu.memory_space<vmem>>, vector<1x128xf32>
    %18 = vector.broadcast %17 : vector<1x128xf32> to vector<8x128xf32>
    %19 = arith.addf %16, %18 : vector<8x128xf32>
    %cst_16 = arith.constant 0.000000e+00 : f32
    %20 = vector.broadcast %cst_16 : f32 to vector<8x128xf32>
    %21 = arith.maximumf %19, %20 : vector<8x128xf32>
    %22 = arith.truncf %21 : vector<8x128xf32> to vector<8x128xbf16>
    %c0_17 = arith.constant 0 : index
    %c0_18 = arith.constant 0 : index
    %23 = vector.load %arg6[%c0_17, %c0_18] : memref<128x1xbf16, #tpu.memory_space<vmem>>, vector<128x1xbf16>
    %cst_19 = arith.constant dense<0.000000e+00> : vector<8x1xf32>
    %24 = tpu.matmul %22, %23, %cst_19 {dimension_numbers = #tpu.dot_dimension_numbers<[1], [0], [0], [1], [0, 0, 1, 1], [], []>} : vector<8x128xbf16>, vector<128x1xbf16>, vector<8x1xf32> -> vector<8x1xf32>
    %c0_20 = arith.constant 0 : index
    %c0_21 = arith.constant 0 : index
    %25 = vector.load %arg9[%c0_20, %c0_21] : memref<1x1xf32, #tpu.memory_space<vmem>>, vector<1x1xf32>
    %26 = vector.broadcast %25 : vector<1x1xf32> to vector<8x1xf32>
    %27 = arith.addf %24, %26 : vector<8x1xf32>
    %cst_22 = arith.constant 0.000000e+00 : f32
    %28 = vector.broadcast %cst_22 : f32 to vector<8x1xf32>
    %29 = arith.maximumf %27, %28 : vector<8x1xf32>
    %c0_23 = arith.constant 0 : index
    %c0_24 = arith.constant 0 : index
    %30 = vector.load %arg10[%c0_23, %c0_24] : memref<8x1xf32, #tpu.memory_space<vmem>>, vector<8x1xf32>
    tpu.vector_store %arg10[%c0_23, %c0_24], %29 {strides = array<i32>} : memref<8x1xf32, #tpu.memory_space<vmem>>, vector<8x1xf32>,
    return
  }
  func.func @transform_0(%arg0: i32) -> (i32, i32) {
    %c0_i32 = arith.constant 0 : i32
    %c0_i32_0 = arith.constant 0 : i32
    return %arg0, %c0_i32 : i32, i32
  }
  func.func @transform_1(%arg0: i32) -> (i32, i32) {
    %c0_i32 = arith.constant 0 : i32
    %c0_i32_0 = arith.constant 0 : i32
    return %arg0, %c0_i32 : i32, i32
  }
  func.func @transform_2(%arg0: i32) -> (i32, i32) {
    %c0_i32 = arith.constant 0 : i32
    %c0_i32_0 = arith.constant 0 : i32
    %c0_i32_1 = arith.constant 0 : i32
    return %c0_i32, %c0_i32_0 : i32, i32
  }
  func.func @transform_3(%arg0: i32) -> (i32, i32) {
    %c0_i32 = arith.constant 0 : i32
    %c0_i32_0 = arith.constant 0 : i32
    %c0_i32_1 = arith.constant 0 : i32
    return %c0_i32, %c0_i32_0 : i32, i32
  }
  func.func @transform_4(%arg0: i32) -> (i32, i32) {
    %c0_i32 = arith.constant 0 : i32
    %c0_i32_0 = arith.constant 0 : i32
    %c0_i32_1 = arith.constant 0 : i32
    return %c0_i32, %c0_i32_0 : i32, i32
  }
  func.func @transform_5(%arg0: i32) -> (i32, i32) {
    %c0_i32 = arith.constant 0 : i32
    %c0_i32_0 = arith.constant 0 : i32
    %c0_i32_1 = arith.constant 0 : i32
    return %c0_i32, %c0_i32_0 : i32, i32
  }
  func.func @transform_6(%arg0: i32) -> (i32, i32) {
    %c0_i32 = arith.constant 0 : i32
    %c0_i32_0 = arith.constant 0 : i32
    %c0_i32_1 = arith.constant 0 : i32
    return %c0_i32, %c0_i32_0 : i32, i32
  }
  func.func @transform_7(%arg0: i32) -> (i32, i32) {
    %c0_i32 = arith.constant 0 : i32
    %c0_i32_0 = arith.constant 0 : i32
    %c0_i32_1 = arith.constant 0 : i32
    return %c0_i32, %c0_i32_0 : i32, i32
  }
  func.func @transform_8(%arg0: i32) -> (i32, i32) {
    %c0_i32 = arith.constant 0 : i32
    %c0_i32_0 = arith.constant 0 : i32
    %c0_i32_1 = arith.constant 0 : i32
    return %c0_i32, %c0_i32_0 : i32, i32
  }
  func.func @transform_9(%arg0: i32) -> (i32, i32) {
    %c0_i32 = arith.constant 0 : i32
    %c0_i32_0 = arith.constant 0 : i32
    return %arg0, %c0_i32 : i32, i32
  }
}

</mosaic_0001>

<llo_original>
// kernel: tpu_custom_call.1
$region0: #{tpu_custom_call.1}
  #allocation0 [shape = 'u32[]', space=smem, size = 0x4, offset = 0x4, fixed_abs, tag = 'smem constant byte address 0x4 - core index']
  #allocation1 [shape = 'u32[72,128]{1,0:T(1,128)}', space=vmem, size = 0x9000, scoped, tag = 'internal scratch']
  #allocation2 [shape = 'f32[1,1]{1,0:T(1,128)S(1)}', space=vmem, size = 0x200, scoped, tag = 'scoped memory for tpu_custom_call.1']
  %s0 = inlined_call_operand.vmem [shape: f32[8,12], index: 0, kind: input, shape index: {}]
  %s1 = inlined_call_operand.vmem [shape: f32[8,4], index: 1, kind: input, shape index: {}]
  %s2 = inlined_call_operand.hbm [shape: bf16[12,128], index: 2, kind: input, shape index: {}]
  %s3 = inlined_call_operand.vmem [shape: bf16[4,128], index: 3, kind: input, shape index: {}]
  %s4 = inlined_call_operand.vmem [shape: bf16[128,128], index: 4, kind: input, shape index: {}]
  %s5 = inlined_call_operand.vmem [shape: bf16[128,1], index: 5, kind: input, shape index: {}]
  %s6 = inlined_call_operand.vmem [shape: f32[1,128], index: 6, kind: input, shape index: {}]
  %s7 = inlined_call_operand.vmem [shape: f32[1,128], index: 7, kind: input, shape index: {}]
  %s8 = inlined_call_operand.<no memory space> [shape: f32[1,1], index: 8, kind: input, shape index: {}]
  %s9 = inlined_call_operand.vmem [shape: f32[8,1], index: 9, kind: output, shape index: {}]
  %s10 = sld [smem:[#allocation0]]
  $region50: #{tpu_custom_call.1} parent=0
    _
  %s12 = ssub.s32 1, %s10
  %s13 = scalar_select 0, %s12, %s10
  %v14 = vstv %s8
  %15 = vst [vmem:[#allocation2] sm:$0x1] %v14
  $region1: #{tpu_custom_call.1} parent=0
    #allocation3 [shape = 'u8[4096]{0}', space=vmem, size = 0x1000, scoped, tag = 'input window, operand 2, single buffered']
    #allocation4 [shape = 's32[1]{0}', space=sflag, size = 0x4, scoped, tag = 'scoped memory for tpu_custom_call.1']
    %16 = vsyncpa [#allocation4], 0
    // Predicated region
    $region2: #{tpu_custom_call.1} parent=1 // pred_check
      _
    $region3: #{tpu_custom_call.1} parent=1 // pred_check_branch
      %18 = sbr.rel (0) target = $region5
    $region4: #{tpu_custom_call.1} parent=1 // pred_region
      _
    $region5: #{tpu_custom_call.1} parent=1 // pred_fallthru
      _
    // Predicated region
    $region6: #{tpu_custom_call.1} parent=1 // pred_check
      _
    $region7: #{tpu_custom_call.1} parent=1 // pred_check_branch
      %20 = sbr.rel (0) target = $region9
    $region8: #{tpu_custom_call.1} parent=1 // pred_region
      _
    $region9: #{tpu_custom_call.1} parent=1 // pred_fallthru
      _
    // Predicated region
    $region10: #{tpu_custom_call.1} parent=1 // pred_check
      _
    $region11: #{tpu_custom_call.1} parent=1 // pred_check_branch
      %22 = sbr.rel (0) target = $region13
    $region12: #{tpu_custom_call.1} parent=1 // pred_region
      %24 = vsyncadd [#allocation4], 0
      %s25 = sshll.u32 %s2, 4
      %s26 = int_to_ptr.hbm [resolvable:$true] %s25
      %s27 = sshll.u32 [#allocation3], 4
      %s28 = int_to_ptr.vmem [resolvable:$true] %s27
      %33 = dma.hbm_to_vmem [thread:$0]  %s26, 128, %s28, [#allocation4], 64, 64, 4
    $region13: #{tpu_custom_call.1} parent=1 // pred_fallthru
      _
    // Predicated region
    $region14: #{tpu_custom_call.1} parent=1 // pred_check
      _
    $region15: #{tpu_custom_call.1} parent=1 // pred_check_branch
      %35 = sbr.rel (0) target = $region17
    $region16: #{tpu_custom_call.1} parent=1 // pred_region
      _
    $region17: #{tpu_custom_call.1} parent=1 // pred_fallthru
      _
    // Predicated region
    $region18: #{tpu_custom_call.1} parent=1 // pred_check
      _
    $region19: #{tpu_custom_call.1} parent=1 // pred_check_branch
      %37 = sbr.rel (0) target = $region21
    $region20: #{tpu_custom_call.1} parent=1 // pred_region
      _
    $region21: #{tpu_custom_call.1} parent=1 // pred_fallthru
      _
    // Predicated region
    $region22: #{tpu_custom_call.1} parent=1 // pred_check
      _
    $region23: #{tpu_custom_call.1} parent=1 // pred_check_branch
      %39 = sbr.rel (0) target = $region25
    $region24: #{tpu_custom_call.1} parent=1 // pred_region
      _
    $region25: #{tpu_custom_call.1} parent=1 // pred_fallthru
      _
    // Predicated region
    $region26: #{tpu_custom_call.1} parent=1 // pred_check
      _
    $region27: #{tpu_custom_call.1} parent=1 // pred_check_branch
      %41 = sbr.rel (0) target = $region29
    $region28: #{tpu_custom_call.1} parent=1 // pred_region
      _
    $region29: #{tpu_custom_call.1} parent=1 // pred_fallthru
      _
    // Predicated region
    $region30: #{tpu_custom_call.1} parent=1 // pred_check
      _
    $region31: #{tpu_custom_call.1} parent=1 // pred_check_branch
      %43 = sbr.rel (0) target = $region33
    $region32: #{tpu_custom_call.1} parent=1 // pred_region
      _
    $region33: #{tpu_custom_call.1} parent=1 // pred_fallthru
      _
    // Predicated region
    $region34: #{tpu_custom_call.1} parent=1 // pred_check
      _
    $region35: #{tpu_custom_call.1} parent=1 // pred_check_branch
      %45 = sbr.rel (0) target = $region37
    $region36: #{tpu_custom_call.1} parent=1 // pred_region
      _
    $region37: #{tpu_custom_call.1} parent=1 // pred_fallthru
      _
    // Predicated region
    $region38: #{tpu_custom_call.1} parent=1 // pred_check
      _
    $region39: #{tpu_custom_call.1} parent=1 // pred_check_branch
      %47 = sbr.rel (0) target = $region41
    $region40: #{tpu_custom_call.1} parent=1 // pred_region
      %49 = dma.done [#allocation4], 128
    $region41: #{tpu_custom_call.1} parent=1 // pred_fallthru
      _
    %v51 = vld [vmem:[%s0] sm:$0xff]
    %v52 = vpack.c.bf16 %v51, %v51
    %v53 = vld [vmem:[%s1] sm:$0xff]
    %v54 = vpack.c.bf16 %v53, %v53
    %v55 = vld [vmem:[#allocation3] sm:$0xf]
    %v56 = vld [vmem:[#allocation3 + $0x4] sm:$0x3]
    %v57 = vld [vmem:[%s3] sm:$0x3]
    %vm58 = vcmask 31744
    %v60 = vsel %vm58, %v54, 0
    %vm62 = vcmask 1041408
    %v64 = vsel %vm62, %v57, 0
    %66 = vmatpush.bf16.msra.mxu0 0
    %67 = vmatpush.bf16.msra.mxu0 0
    %68 = vmatpush.bf16.msra.mxu0 0
    %69 = vmatpush.bf16.msra.mxu0 0
    %70 = vmatpush.bf16.msra.mxu0 0
    %71 = vmatpush.bf16.msra.mxu0 0
    %72 = vmatpush.bf16.msra.mxu0 0
    %73 = vmatpush.bf16.msra.mxu0 %v64
    %74 = vmatmul.bf16.gmra.mxu0 %v60
    %v75 = vpop.f32.mrf.mxu0
    %v76 = vadd.f32 0.0, %v75
    %v77 = vpop.f32.mrf.mxu0
    %78 = vdwg.mxu0
    %v81 = vunpack.c.l.b16 %v55
    %v82 = vunpack.c.l.b16 %v56
    %v83 = vpack.c.b16 %v82, %v81
    %vm84 = vcmask 97280
    %v86 = vsel %vm84, %v52, 0
    %vm88 = vcmask 1045504
    %v90 = vsel %vm88, %v83, 0
    %92 = vmatpush.bf16.msra.mxu0 0
    %93 = vmatpush.bf16.msra.mxu0 0
    %94 = vmatpush.bf16.msra.mxu0 0
    %95 = vmatpush.bf16.msra.mxu0 0
    %96 = vmatpush.bf16.msra.mxu0 0
    %97 = vmatpush.bf16.msra.mxu0 0
    %98 = vmatpush.bf16.msra.mxu0 0
    %99 = vmatpush.bf16.msra.mxu0 %v90
    %100 = vmatmul.bf16.gmra.mxu0 %v86
    %v101 = vpop.f32.mrf.mxu0
    %v102 = vadd.f32 %v76, %v101
    %v103 = vpop.f32.mrf.mxu0
    %104 = vdwg.mxu0
    %v105 = vld [vmem:[%s6] sm:$0x1]
    %v107 = vperm.slane %v105, 0
    %v109 = vadd.f32 %v102, %v107
    %v110 = vmax.f32 %v109, 0.0
    %v111 = vpack.c.bf16 %v110, %v110
    %v112 = vld [vmem:[%s4] sm:$0xf]
    %v113 = vld [vmem:[%s4 + $0x4] sm:$0xf]
    %v114 = vld [vmem:[%s4 + $0x8] sm:$0xf]
    %v115 = vld [vmem:[%s4 + $0xc] sm:$0xf]
    %v116 = vld [vmem:[%s4 + $0x10] sm:$0xf]
    %v117 = vld [vmem:[%s4 + $0x14] sm:$0xf]
    %v118 = vld [vmem:[%s4 + $0x18] sm:$0xf]
    %v119 = vld [vmem:[%s4 + $0x1c] sm:$0xf]
    %v120 = vld [vmem:[%s4 + $0x20] sm:$0xf]
    %v121 = vld [vmem:[%s4 + $0x24] sm:$0xf]
    %v122 = vld [vmem:[%s4 + $0x28] sm:$0xf]
    %v123 = vld [vmem:[%s4 + $0x2c] sm:$0xf]
    %v124 = vld [vmem:[%s4 + $0x30] sm:$0xf]
    %v125 = vld [vmem:[%s4 + $0x34] sm:$0xf]
    %v126 = vld [vmem:[%s4 + $0x38] sm:$0xf]
    %v127 = vld [vmem:[%s4 + $0x3c] sm:$0xf]
    %v128 = vld [vmem:[%s7] sm:$0x1]
    %v130 = vperm.slane %v128, 0
    %v148 = vunpack.c.l.b16 %v112
    %v149 = vunpack.c.l.b16 %v113
    %v150 = vunpack.c.l.b16 %v114
    %v151 = vunpack.c.l.b16 %v115
    %v152 = vunpack.c.l.b16 %v116
    %v153 = vunpack.c.l.b16 %v117
    %v154 = vunpack.c.l.b16 %v118
    %v155 = vunpack.c.l.b16 %v119
    %v156 = vunpack.c.l.b16 %v120
    %v157 = vunpack.c.l.b16 %v121
    %v158 = vunpack.c.l.b16 %v122
    %v159 = vunpack.c.l.b16 %v123
    %v160 = vunpack.c.l.b16 %v124
    %v161 = vunpack.c.l.b16 %v125
    %v162 = vunpack.c.l.b16 %v126
    %v163 = vunpack.c.l.b16 %v127
    %v164 = vpack.c.b16 %v149, %v148
    %v165 = vpack.c.b16 %v151, %v150
    %v166 = vpack.c.b16 %v153, %v152
    %v167 = vpack.c.b16 %v155, %v154
    %v168 = vpack.c.b16 %v157, %v156
    %v169 = vpack.c.b16 %v159, %v158
    %v170 = vpack.c.b16 %v161, %v160
    %v171 = vpack.c.b16 %v163, %v162
    %180 = vmatpush.bf16.msra.mxu0 %v171
    %181 = vmatpush.bf16.msra.mxu0 %v170
    %182 = vmatpush.bf16.msra.mxu0 %v169
    %183 = vmatpush.bf16.msra.mxu0 %v168
    %184 = vmatpush.bf16.msra.mxu0 %v167
    %185 = vmatpush.bf16.msra.mxu0 %v166
    %186 = vmatpush.bf16.msra.mxu0 %v165
    %187 = vmatpush.bf16.msra.mxu0 %v164
    %188 = vmatmul.bf16.gmra.mxu0 %v111
    %v189 = vpop.f32.mrf.mxu0
    %v190 = vadd.f32 %v130, %v189
    %v191 = vpop.f32.mrf.mxu0
    %192 = vdwg.mxu0
    %v193 = vmax.f32 %v190, 0.0
    %v194 = vpack.c.bf16 %v193, %v193
    %v195 = vld [vmem:[%s5] sm:$0xf]
    %v196 = vld [vmem:[%s5 + $0x4] sm:$0xf]
    %v197 = vld [vmem:[%s5 + $0x8] sm:$0xf]
    %v198 = vld [vmem:[%s5 + $0xc] sm:$0xf]
    %v199 = vld [vmem:[%s5 + $0x10] sm:$0xf]
    %v200 = vld [vmem:[%s5 + $0x14] sm:$0xf]
    %v201 = vld [vmem:[%s5 + $0x18] sm:$0xf]
    %v202 = vld [vmem:[%s5 + $0x1c] sm:$0xf]
    %v203 = vld [vmem:[%s5 + $0x20] sm:$0xf]
    %v204 = vld [vmem:[%s5 + $0x24] sm:$0xf]
    %v205 = vld [vmem:[%s5 + $0x28] sm:$0xf]
    %v206 = vld [vmem:[%s5 + $0x2c] sm:$0xf]
    %v207 = vld [vmem:[%s5 + $0x30] sm:$0xf]
    %v208 = vld [vmem:[%s5 + $0x34] sm:$0xf]
    %v209 = vld [vmem:[%s5 + $0x38] sm:$0xf]
    %v210 = vld [vmem:[%s5 + $0x3c] sm:$0xf]
    %v211 = vld [vmem:[#allocation2] sm:$0x1]
    %v213 = vperm.slane %v211, 0
    %v231 = vunpack.c.l.b16 %v195
    %v232 = vunpack.c.l.b16 %v196
    %v233 = vunpack.c.l.b16 %v197
    %v234 = vunpack.c.l.b16 %v198
    %v235 = vunpack.c.l.b16 %v199
    %v236 = vunpack.c.l.b16 %v200
    %v237 = vunpack.c.l.b16 %v201
    %v238 = vunpack.c.l.b16 %v202
    %v239 = vunpack.c.l.b16 %v203
    %v240 = vunpack.c.l.b16 %v204
    %v241 = vunpack.c.l.b16 %v205
    %v242 = vunpack.c.l.b16 %v206
    %v243 = vunpack.c.l.b16 %v207
    %v244 = vunpack.c.l.b16 %v208
    %v245 = vunpack.c.l.b16 %v209
    %v246 = vunpack.c.l.b16 %v210
    %v247 = vpack.c.b16 %v232, %v231
    %v248 = vpack.c.b16 %v234, %v233
    %v249 = vpack.c.b16 %v236, %v235
    %v250 = vpack.c.b16 %v238, %v237
    %v251 = vpack.c.b16 %v240, %v239
    %v252 = vpack.c.b16 %v242, %v241
    %v253 = vpack.c.b16 %v244, %v243
    %v254 = vpack.c.b16 %v246, %v245
    %263 = vmatpush.bf16.msra.mxu0 %v254
    %264 = vmatpush.bf16.msra.mxu0 %v253
    %265 = vmatpush.bf16.msra.mxu0 %v252
    %266 = vmatpush.bf16.msra.mxu0 %v251
    %267 = vmatpush.bf16.msra.mxu0 %v250
    %268 = vmatpush.bf16.msra.mxu0 %v249
    %269 = vmatpush.bf16.msra.mxu0 %v248
    %270 = vmatpush.bf16.msra.mxu0 %v247
    %271 = vmatmul.bf16.gmra.mxu0 %v194
    %v272 = vpop.f32.mrf.mxu0
    %v273 = vadd.f32 %v213, %v272
    %v274 = vpop.f32.mrf.mxu0
    %275 = vdwg.mxu0
    %v276 = vmax.f32 %v273, 0.0
    %vm277 = vcmask 7168
    %278 = vst.msk [vmem:[%s9] sm:$0xff] %vm277, %v276
    // Predicated region
    $region42: #{tpu_custom_call.1} parent=1 // pred_check
      _
    $region43: #{tpu_custom_call.1} parent=1 // pred_check_branch
      %280 = sbr.rel (0) target = $region45
    $region44: #{tpu_custom_call.1} parent=1 // pred_region
      _
    $region45: #{tpu_custom_call.1} parent=1 // pred_fallthru
      _
    // Predicated region
    $region46: #{tpu_custom_call.1} parent=1 // pred_check
      _
    $region47: #{tpu_custom_call.1} parent=1 // pred_check_branch
      %282 = sbr.rel (0) target = $region49
    $region48: #{tpu_custom_call.1} parent=1 // pred_region
      _
    $region49: #{tpu_custom_call.1} parent=1 // pred_fallthru
      _
    %283 = vsyncpa [#allocation4], 1

</llo_original>
